<compile_context>
chip_gen: v6e
topology: v6e:2x2x1
jax: 0.10.0
libtpu: 0.0.40
codegen_flags: <defaults>
</compile_context>

<pallas_src>
import math
import functools

import jax
import jax.numpy as jnp
from jax.experimental import pallas as pl
from jax.experimental.pallas import tpu as pltpu


def _mlp_kernel(*refs, training: bool):
    """Fused MLP forward for one batch tile.

    refs = (x, w1, b1, w2, b2, w3, b3, w4, b4, w5, b5, w6, b6, [mask], out)
    Weights are bf16 (MXU operands), biases and activations stay f32.
    """
    o_ref = refs[-1]
    x_ref = refs[0]
    (w1, b1, w2, b2, w3, b3, w4, b4, w5, b5, w6, b6) = refs[1:13]
    mask_ref = refs[13] if training else None

    def dense(h, w_ref, b_ref):
        # bf16 operands into the MXU (≈3x fewer vmatmul pushes than f32),
        # f32 accumulation; inter-layer activations remain f32 (v5e-safe VPU).
        return jnp.dot(h.astype(jnp.bfloat16), w_ref[...],
                       preferred_element_type=jnp.float32) + b_ref[...]

    x = x_ref[...].astype(jnp.float32)

    # fc1 + relu
    h = jnp.maximum(dense(x, w1, b1), 0.0)
    # fc2 + BatchNorm (eval mode, folded into w2/b2 in the wrapper) + relu
    h = jnp.maximum(dense(h, w2, b2), 0.0)
    # fc3 + dropout (mask already scaled by 1/(1-p))
    h = dense(h, w3, b3)
    if mask_ref is not None:
        h = h * mask_ref[...]
    # fc4 + BatchNorm (folded) + relu
    h = jnp.maximum(dense(h, w4, b4), 0.0)
    # fc5 + relu
    h = jnp.maximum(dense(h, w5, b5), 0.0)
    # predict + softmax (dim=1 for 2-D input)
    logits = dense(h, w6, b6)
    m = jnp.max(logits, axis=-1, keepdims=True)
    e = jnp.exp(logits - m)
    o_ref[...] = (e / jnp.sum(e, axis=-1, keepdims=True)).astype(o_ref.dtype)


def mlp_forward(x, params, *, p=0.25, training=False, dropout_rng=None,
                block_rows=1024):
    """x: [N, in_feat] float32.  Returns softmax probabilities [N, num_cls]."""
    N, in_feat = x.shape
    num_cls = params["w6"].shape[1]
    eps = params.get("bn_eps", 1e-5)

    # ---- fold eval-mode BatchNorm1d into fc2 / fc4 (exact in eval mode) ----
    bn_scale = params["bn_gamma"] / jnp.sqrt(params["bn_var"] + eps)   # [1, 64]
    bn_bias = params["bn_beta"] - params["bn_mean"] * bn_scale          # [1, 64]

    def fold(w, b):
        return w * bn_scale, b * bn_scale + bn_bias

    w2f, b2f = fold(params["w2"], params["b2"])
    w4f, b4f = fold(params["w4"], params["b4"])

    bf16 = lambda w: w.astype(jnp.bfloat16)
    ordered = (bf16(params["w1"]), params["b1"],
               bf16(w2f), b2f,
               bf16(params["w3"]), params["b3"],
               bf16(w4f), b4f,
               bf16(params["w5"]), params["b5"],
               bf16(params["w6"]), params["b6"])

    # ---- batch tiling ----
    # Tile is a multiple of 8 sublanes, capped at block_rows (amortizes the
    # ~0.35us per-grid-step overhead) and sized so the grid has >=2 steps when
    # the batch is big enough (so v7x's 2 TensorCores both get work via the
    # "parallel" grid axis).  No whole-array padding: Pallas masks the ragged
    # last tile's out-of-bounds writes.
    n_pad8 = ((N + 7) // 8) * 8
    half = ((-(-n_pad8 // 2)) + 7) // 8 * 8
    t_n = max(8, min(block_rows, half))
    grid = (pl.cdiv(N, t_n),)

    in_specs = [pl.BlockSpec((t_n, in_feat), lambda i: (i, 0))]
    # constant index_maps -> tiny weight/bias blocks stay resident across steps
    in_specs += [pl.BlockSpec(a.shape, lambda i: (0, 0)) for a in ordered]
    args = [x, *ordered]

    use_dropout = bool(training and p > 0.0)
    if use_dropout:
        # TODO(synk): in-kernel pltpu.prng_* dropout would avoid this HBM mask,
        # but has no CPU/interpret lowering; mask is generated host-side.
        if dropout_rng is None:
            dropout_rng = jax.random.PRNGKey(0)
        hidden3 = params["w3"].shape[1]
        keep = jax.random.bernoulli(dropout_rng, 1.0 - p, (N, hidden3))
        mask = keep.astype(jnp.float32) * jnp.float32(1.0 / (1.0 - p))
        in_specs.append(pl.BlockSpec((t_n, hidden3), lambda i: (i, 0)))
        args.append(mask)

    kernel = functools.partial(_mlp_kernel, training=use_dropout)

    out = pl.pallas_call(
        kernel,
        out_shape=jax.ShapeDtypeStruct((N, num_cls), jnp.float32),
        grid_spec=pltpu.PrefetchScalarGridSpec(
            num_scalar_prefetch=0,
            grid=grid,
            in_specs=in_specs,
            out_specs=pl.BlockSpec((t_n, num_cls), lambda i: (i, 0)),
        ),
        compiler_params=pltpu.CompilerParams(
            dimension_semantics=("parallel",),   # shard batch tiles over TCs
        ),
    )(*args)
    return out


if __name__ == "__main__":
    in_feat, num_cls, batch = 16, 10, 8

    key = jax.random.PRNGKey(0)
    k_x, k_params, k_drop = jax.random.split(key, 3)

    def linear_params(k, fan_in, fan_out):
        kw, kb = jax.random.split(k)
        lim = 1.0 / math.sqrt(fan_in)
        w = jax.random.uniform(kw, (fan_in, fan_out), minval=-lim, maxval=lim,
                               dtype=jnp.float32)
        b = jax.random.uniform(kb, (1, fan_out), minval=-lim, maxval=lim,
                               dtype=jnp.float32)
        return w, b

    dims = [(in_feat, 32), (32, 64), (64, 128), (128, 64), (64, 32), (32, num_cls)]
    keys = jax.random.split(k_params, len(dims) + 1)
    params = {}
    for idx, (fi, fo) in enumerate(dims):
        w, b = linear_params(keys[idx], fi, fo)
        params[f"w{idx + 1}"] = w
        params[f"b{idx + 1}"] = b

    # BatchNorm1d(64): affine params + running stats (eval semantics)
    kb1, kb2, kb3, kb4 = jax.random.split(keys[-1], 4)
    params["bn_gamma"] = jax.random.uniform(kb1, (1, 64), minval=0.5, maxval=1.5,
                                            dtype=jnp.float32)
    params["bn_beta"] = jax.random.uniform(kb2, (1, 64), minval=-0.5, maxval=0.5,
                                           dtype=jnp.float32)
    params["bn_mean"] = jax.random.normal(kb3, (1, 64), dtype=jnp.float32) * 0.1
    params["bn_var"] = jax.random.uniform(kb4, (1, 64), minval=0.5, maxval=1.5,
                                          dtype=jnp.float32)
    params["bn_eps"] = 1e-5

    x = jax.random.normal(k_x, (batch, in_feat), dtype=jnp.float32)

    out = jax.block_until_ready(mlp_forward(x, params, p=0.25, training=False))

    # plain-JAX f32 reference (eval mode: dropout = identity, BN running stats)
    bn_scale = params["bn_gamma"] / jnp.sqrt(params["bn_var"] + params["bn_eps"])
    bn_bias = params["bn_beta"] - params["bn_mean"] * bn_scale

    def ref_forward(xr):
        h = jax.nn.relu(xr @ params["w1"] + params["b1"])
        h = jax.nn.relu((h @ params["w2"] + params["b2"]) * bn_scale + bn_bias)
        h = h @ params["w3"] + params["b3"]
        h = jax.nn.relu((h @ params["w4"] + params["b4"]) * bn_scale + bn_bias)
        h = jax.nn.relu(h @ params["w5"] + params["b5"])
        logits = h @ params["w6"] + params["b6"]
        return jax.nn.softmax(logits, axis=-1)

    with jax.default_matmul_precision("float32"):
        ref = jax.block_until_ready(ref_forward(x))

    assert out.shape == (batch, num_cls)
    assert bool(jnp.all(jnp.isfinite(out)))
    # kernel uses bf16 MXU operands with f32 accumulation -> loosened tolerance
    assert jnp.allclose(out, ref, atol=2e-2, rtol=2e-2), "mismatch vs reference"
    row_sums = jnp.sum(out, axis=-1)
    assert jnp.allclose(row_sums, jnp.ones_like(row_sums), atol=1e-3)

    # exercise the training / dropout path once (shape + finiteness check)
    out_train = jax.block_until_ready(
        mlp_forward(x, params, p=0.25, training=True, dropout_rng=k_drop))
    assert out_train.shape == (batch, num_cls)
    assert bool(jnp.all(jnp.isfinite(out_train)))

    print("KERNEL_OK")
</pallas_src>

<mosaic_0001>
module attributes {stable_mosaic.version = 11 : i64} {
  func.func @_mlp_kernel(%arg0: i32, %arg1: memref<8x16xf32, #tpu.memory_space<vmem>>, %arg2: memref<16x32xbf16, #tpu.memory_space<vmem>>, %arg3: memref<1x32xf32, #tpu.memory_space<vmem>>, %arg4: memref<32x64xbf16, #tpu.memory_space<vmem>>, %arg5: memref<1x64xf32, #tpu.memory_space<vmem>>, %arg6: memref<64x128xbf16, #tpu.memory_space<vmem>>, %arg7: memref<1x128xf32, #tpu.memory_space<vmem>>, %arg8: memref<128x64xbf16, #tpu.memory_space<vmem>>, %arg9: memref<1x64xf32, #tpu.memory_space<vmem>>, %arg10: memref<64x32xbf16, #tpu.memory_space<vmem>>, %arg11: memref<1x32xf32, #tpu.memory_space<vmem>>, %arg12: memref<32x10xbf16, #tpu.memory_space<vmem>>, %arg13: memref<1x10xf32, #tpu.memory_space<vmem>>, %arg14: memref<8x10xf32, #tpu.memory_space<vmem>>) attributes {dimension_semantics = [#tpu.dimension_semantics<parallel>], iteration_bounds = array<i64: 1>, scalar_prefetch = 0 : i64, scratch_operands = 0 : i64, tpu.core_type = #tpu.core_type<tc>, window_params = [{transform_indices = @transform_0, window_bounds = array<i64: 8, 16>}, {pipeline_mode = #tpu.pipeline_mode<synchronous>, transform_indices = @transform_1, window_bounds = array<i64: 16, 32>}, {pipeline_mode = #tpu.pipeline_mode<synchronous>, transform_indices = @transform_2, window_bounds = array<i64: 1, 32>}, {pipeline_mode = #tpu.pipeline_mode<synchronous>, transform_indices = @transform_3, window_bounds = array<i64: 32, 64>}, {pipeline_mode = #tpu.pipeline_mode<synchronous>, transform_indices = @transform_4, window_bounds = array<i64: 1, 64>}, {pipeline_mode = #tpu.pipeline_mode<synchronous>, transform_indices = @transform_5, window_bounds = array<i64: 64, 128>}, {pipeline_mode = #tpu.pipeline_mode<synchronous>, transform_indices = @transform_6, window_bounds = array<i64: 1, 128>}, {pipeline_mode = #tpu.pipeline_mode<synchronous>, transform_indices = @transform_7, window_bounds = array<i64: 128, 64>}, {pipeline_mode = #tpu.pipeline_mode<synchronous>, transform_indices = @transform_8, window_bounds = array<i64: 1, 64>}, {pipeline_mode = #tpu.pipeline_mode<synchronous>, transform_indices = @transform_9, window_bounds = array<i64: 64, 32>}, {pipeline_mode = #tpu.pipeline_mode<synchronous>, transform_indices = @transform_10, window_bounds = array<i64: 1, 32>}, {pipeline_mode = #tpu.pipeline_mode<synchronous>, transform_indices = @transform_11, window_bounds = array<i64: 32, 10>}, {pipeline_mode = #tpu.pipeline_mode<synchronous>, transform_indices = @transform_12, window_bounds = array<i64: 1, 10>}, {transform_indices = @transform_13, window_bounds = array<i64: 8, 10>}]} {
    %c0 = arith.constant 0 : index
    %c0_0 = arith.constant 0 : index
    %0 = vector.load %arg1[%c0, %c0_0] : memref<8x16xf32, #tpu.memory_space<vmem>>, vector<8x16xf32>
    %1 = arith.truncf %0 : vector<8x16xf32> to vector<8x16xbf16>
    %c0_1 = arith.constant 0 : index
    %c0_2 = arith.constant 0 : index
    %2 = vector.load %arg2[%c0_1, %c0_2] : memref<16x32xbf16, #tpu.memory_space<vmem>>, vector<16x32xbf16>
    %cst = arith.constant dense<0.000000e+00> : vector<8x32xf32>
    %3 = tpu.matmul %1, %2, %cst {dimension_numbers = #tpu.dot_dimension_numbers<[1], [0], [0], [1], [0, 0, 1, 1], [], []>} : vector<8x16xbf16>, vector<16x32xbf16>, vector<8x32xf32> -> vector<8x32xf32>
    %c0_3 = arith.constant 0 : index
    %c0_4 = arith.constant 0 : index
    %4 = vector.load %arg3[%c0_3, %c0_4] : memref<1x32xf32, #tpu.memory_space<vmem>>, vector<1x32xf32>
    %5 = vector.broadcast %4 : vector<1x32xf32> to vector<8x32xf32>
    %6 = arith.addf %3, %5 : vector<8x32xf32>
    %cst_5 = arith.constant 0.000000e+00 : f32
    %7 = vector.broadcast %cst_5 : f32 to vector<8x32xf32>
    %8 = arith.maximumf %6, %7 : vector<8x32xf32>
    %9 = arith.truncf %8 : vector<8x32xf32> to vector<8x32xbf16>
    %c0_6 = arith.constant 0 : index
    %c0_7 = arith.constant 0 : index
    %10 = vector.load %arg4[%c0_6, %c0_7] : memref<32x64xbf16, #tpu.memory_space<vmem>>, vector<32x64xbf16>
    %cst_8 = arith.constant dense<0.000000e+00> : vector<8x64xf32>
    %11 = tpu.matmul %9, %10, %cst_8 {dimension_numbers = #tpu.dot_dimension_numbers<[1], [0], [0], [1], [0, 0, 1, 1], [], []>} : vector<8x32xbf16>, vector<32x64xbf16>, vector<8x64xf32> -> vector<8x64xf32>
    %c0_9 = arith.constant 0 : index
    %c0_10 = arith.constant 0 : index
    %12 = vector.load %arg5[%c0_9, %c0_10] : memref<1x64xf32, #tpu.memory_space<vmem>>, vector<1x64xf32>
    %13 = vector.broadcast %12 : vector<1x64xf32> to vector<8x64xf32>
    %14 = arith.addf %11, %13 : vector<8x64xf32>
    %cst_11 = arith.constant 0.000000e+00 : f32
    %15 = vector.broadcast %cst_11 : f32 to vector<8x64xf32>
    %16 = arith.maximumf %14, %15 : vector<8x64xf32>
    %17 = arith.truncf %16 : vector<8x64xf32> to vector<8x64xbf16>
    %c0_12 = arith.constant 0 : index
    %c0_13 = arith.constant 0 : index
    %18 = vector.load %arg6[%c0_12, %c0_13] : memref<64x128xbf16, #tpu.memory_space<vmem>>, vector<64x128xbf16>
    %cst_14 = arith.constant dense<0.000000e+00> : vector<8x128xf32>
    %19 = tpu.matmul %17, %18, %cst_14 {dimension_numbers = #tpu.dot_dimension_numbers<[1], [0], [0], [1], [0, 0, 1, 1], [], []>} : vector<8x64xbf16>, vector<64x128xbf16>, vector<8x128xf32> -> vector<8x128xf32>
    %c0_15 = arith.constant 0 : index
    %c0_16 = arith.constant 0 : index
    %20 = vector.load %arg7[%c0_15, %c0_16] : memref<1x128xf32, #tpu.memory_space<vmem>>, vector<1x128xf32>
    %21 = vector.broadcast %20 : vector<1x128xf32> to vector<8x128xf32>
    %22 = arith.addf %19, %21 : vector<8x128xf32>
    %23 = arith.truncf %22 : vector<8x128xf32> to vector<8x128xbf16>
    %c0_17 = arith.constant 0 : index
    %c0_18 = arith.constant 0 : index
    %24 = vector.load %arg8[%c0_17, %c0_18] : memref<128x64xbf16, #tpu.memory_space<vmem>>, vector<128x64xbf16>
    %cst_19 = arith.constant dense<0.000000e+00> : vector<8x64xf32>
    %25 = tpu.matmul %23, %24, %cst_19 {dimension_numbers = #tpu.dot_dimension_numbers<[1], [0], [0], [1], [0, 0, 1, 1], [], []>} : vector<8x128xbf16>, vector<128x64xbf16>, vector<8x64xf32> -> vector<8x64xf32>
    %c0_20 = arith.constant 0 : index
    %c0_21 = arith.constant 0 : index
    %26 = vector.load %arg9[%c0_20, %c0_21] : memref<1x64xf32, #tpu.memory_space<vmem>>, vector<1x64xf32>
    %27 = vector.broadcast %26 : vector<1x64xf32> to vector<8x64xf32>
    %28 = arith.addf %25, %27 : vector<8x64xf32>
    %cst_22 = arith.constant 0.000000e+00 : f32
    %29 = vector.broadcast %cst_22 : f32 to vector<8x64xf32>
    %30 = arith.maximumf %28, %29 : vector<8x64xf32>
    %31 = arith.truncf %30 : vector<8x64xf32> to vector<8x64xbf16>
    %c0_23 = arith.constant 0 : index
    %c0_24 = arith.constant 0 : index
    %32 = vector.load %arg10[%c0_23, %c0_24] : memref<64x32xbf16, #tpu.memory_space<vmem>>, vector<64x32xbf16>
    %cst_25 = arith.constant dense<0.000000e+00> : vector<8x32xf32>
    %33 = tpu.matmul %31, %32, %cst_25 {dimension_numbers = #tpu.dot_dimension_numbers<[1], [0], [0], [1], [0, 0, 1, 1], [], []>} : vector<8x64xbf16>, vector<64x32xbf16>, vector<8x32xf32> -> vector<8x32xf32>
    %c0_26 = arith.constant 0 : index
    %c0_27 = arith.constant 0 : index
    %34 = vector.load %arg11[%c0_26, %c0_27] : memref<1x32xf32, #tpu.memory_space<vmem>>, vector<1x32xf32>
    %35 = vector.broadcast %34 : vector<1x32xf32> to vector<8x32xf32>
    %36 = arith.addf %33, %35 : vector<8x32xf32>
    %cst_28 = arith.constant 0.000000e+00 : f32
    %37 = vector.broadcast %cst_28 : f32 to vector<8x32xf32>
    %38 = arith.maximumf %36, %37 : vector<8x32xf32>
    %39 = arith.truncf %38 : vector<8x32xf32> to vector<8x32xbf16>
    %c0_29 = arith.constant 0 : index
    %c0_30 = arith.constant 0 : index
    %40 = vector.load %arg12[%c0_29, %c0_30] : memref<32x10xbf16, #tpu.memory_space<vmem>>, vector<32x10xbf16>
    %cst_31 = arith.constant dense<0.000000e+00> : vector<8x10xf32>
    %41 = tpu.matmul %39, %40, %cst_31 {dimension_numbers = #tpu.dot_dimension_numbers<[1], [0], [0], [1], [0, 0, 1, 1], [], []>} : vector<8x32xbf16>, vector<32x10xbf16>, vector<8x10xf32> -> vector<8x10xf32>
    %c0_32 = arith.constant 0 : index
    %c0_33 = arith.constant 0 : index
    %42 = vector.load %arg13[%c0_32, %c0_33] : memref<1x10xf32, #tpu.memory_space<vmem>>, vector<1x10xf32>
    %43 = vector.broadcast %42 : vector<1x10xf32> to vector<8x10xf32>
    %44 = arith.addf %41, %43 : vector<8x10xf32>
    %cst_34 = arith.constant dense<0xFF800000> : vector<8xf32>
    %45 = vector.multi_reduction <maximumf>, %44, %cst_34 [1] : vector<8x10xf32> to vector<8xf32>
    %46 = vector.shape_cast %45 : vector<8xf32> to vector<8x1xf32>
    %47 = vector.broadcast %46 : vector<8x1xf32> to vector<8x10xf32>
    %48 = arith.subf %44, %47 : vector<8x10xf32>
    %49 = math.exp %48 : vector<8x10xf32>
    %cst_35 = arith.constant dense<0.000000e+00> : vector<8xf32>
    %50 = vector.multi_reduction <add>, %49, %cst_35 [1] : vector<8x10xf32> to vector<8xf32>
    %51 = vector.shape_cast %50 : vector<8xf32> to vector<8x1xf32>
    %52 = vector.broadcast %51 : vector<8x1xf32> to vector<8x10xf32>
    %53 = arith.divf %49, %52 : vector<8x10xf32>
    %c0_36 = arith.constant 0 : index
    %c0_37 = arith.constant 0 : index
    %54 = vector.load %arg14[%c0_36, %c0_37] : memref<8x10xf32, #tpu.memory_space<vmem>>, vector<8x10xf32>
    tpu.vector_store %arg14[%c0_36, %c0_37], %53 {strides = array<i32>} : memref<8x10xf32, #tpu.memory_space<vmem>>, vector<8x10xf32>,
    return
  }
  func.func @transform_0(%arg0: i32) -> (i32, i32) {
    %c0_i32 = arith.constant 0 : i32
    %c0_i32_0 = arith.constant 0 : i32
    return %arg0, %c0_i32 : i32, i32
  }
  func.func @transform_1(%arg0: i32) -> (i32, i32) {
    %c0_i32 = arith.constant 0 : i32
    %c0_i32_0 = arith.constant 0 : i32
    %c0_i32_1 = arith.constant 0 : i32
    return %c0_i32, %c0_i32_0 : i32, i32
  }
  func.func @transform_2(%arg0: i32) -> (i32, i32) {
    %c0_i32 = arith.constant 0 : i32
    %c0_i32_0 = arith.constant 0 : i32
    %c0_i32_1 = arith.constant 0 : i32
    return %c0_i32, %c0_i32_0 : i32, i32
  }
  func.func @transform_3(%arg0: i32) -> (i32, i32) {
    %c0_i32 = arith.constant 0 : i32
    %c0_i32_0 = arith.constant 0 : i32
    %c0_i32_1 = arith.constant 0 : i32
    return %c0_i32, %c0_i32_0 : i32, i32
  }
  func.func @transform_4(%arg0: i32) -> (i32, i32) {
    %c0_i32 = arith.constant 0 : i32
    %c0_i32_0 = arith.constant 0 : i32
    %c0_i32_1 = arith.constant 0 : i32
    return %c0_i32, %c0_i32_0 : i32, i32
  }
  func.func @transform_5(%arg0: i32) -> (i32, i32) {
    %c0_i32 = arith.constant 0 : i32
    %c0_i32_0 = arith.constant 0 : i32
    %c0_i32_1 = arith.constant 0 : i32
    return %c0_i32, %c0_i32_0 : i32, i32
  }
  func.func @transform_6(%arg0: i32) -> (i32, i32) {
    %c0_i32 = arith.constant 0 : i32
    %c0_i32_0 = arith.constant 0 : i32
    %c0_i32_1 = arith.constant 0 : i32
    return %c0_i32, %c0_i32_0 : i32, i32
  }
  func.func @transform_7(%arg0: i32) -> (i32, i32) {
    %c0_i32 = arith.constant 0 : i32
    %c0_i32_0 = arith.constant 0 : i32
    %c0_i32_1 = arith.constant 0 : i32
    return %c0_i32, %c0_i32_0 : i32, i32
  }
  func.func @transform_8(%arg0: i32) -> (i32, i32) {
    %c0_i32 = arith.constant 0 : i32
    %c0_i32_0 = arith.constant 0 : i32
    %c0_i32_1 = arith.constant 0 : i32
    return %c0_i32, %c0_i32_0 : i32, i32
  }
  func.func @transform_9(%arg0: i32) -> (i32, i32) {
    %c0_i32 = arith.constant 0 : i32
    %c0_i32_0 = arith.constant 0 : i32
    %c0_i32_1 = arith.constant 0 : i32
    return %c0_i32, %c0_i32_0 : i32, i32
  }
  func.func @transform_10(%arg0: i32) -> (i32, i32) {
    %c0_i32 = arith.constant 0 : i32
    %c0_i32_0 = arith.constant 0 : i32
    %c0_i32_1 = arith.constant 0 : i32
    return %c0_i32, %c0_i32_0 : i32, i32
  }
  func.func @transform_11(%arg0: i32) -> (i32, i32) {
    %c0_i32 = arith.constant 0 : i32
    %c0_i32_0 = arith.constant 0 : i32
    %c0_i32_1 = arith.constant 0 : i32
    return %c0_i32, %c0_i32_0 : i32, i32
  }
  func.func @transform_12(%arg0: i32) -> (i32, i32) {
    %c0_i32 = arith.constant 0 : i32
    %c0_i32_0 = arith.constant 0 : i32
    %c0_i32_1 = arith.constant 0 : i32
    return %c0_i32, %c0_i32_0 : i32, i32
  }
  func.func @transform_13(%arg0: i32) -> (i32, i32) {
    %c0_i32 = arith.constant 0 : i32
    %c0_i32_0 = arith.constant 0 : i32
    return %arg0, %c0_i32 : i32, i32
  }
}

</mosaic_0001>

<llo_original>
// kernel: tpu_custom_call.1
$region0: #{tpu_custom_call.1}
  #allocation0 [shape = 'u32[]', space=smem, size = 0x4, offset = 0x4, fixed_abs, tag = 'smem constant byte address 0x4 - core index']
  #allocation1 [shape = 'u32[144,128]{1,0:T(1,128)}', space=vmem, size = 0x12000, scoped, tag = 'internal scratch']
  %s0 = inlined_call_operand.vmem [shape: f32[8,16], index: 0, kind: input, shape index: {}]
  %s1 = inlined_call_operand.vmem [shape: bf16[16,32], index: 1, kind: input, shape index: {}]
  %s2 = inlined_call_operand.vmem [shape: f32[1,32], index: 2, kind: input, shape index: {}]
  %s3 = inlined_call_operand.vmem [shape: bf16[32,64], index: 3, kind: input, shape index: {}]
  %s4 = inlined_call_operand.vmem [shape: f32[1,64], index: 4, kind: input, shape index: {}]
  %s5 = inlined_call_operand.vmem [shape: bf16[64,128], index: 5, kind: input, shape index: {}]
  %s6 = inlined_call_operand.vmem [shape: f32[1,128], index: 6, kind: input, shape index: {}]
  %s7 = inlined_call_operand.vmem [shape: bf16[128,64], index: 7, kind: input, shape index: {}]
  %s8 = inlined_call_operand.vmem [shape: f32[1,64], index: 8, kind: input, shape index: {}]
  %s9 = inlined_call_operand.vmem [shape: bf16[64,32], index: 9, kind: input, shape index: {}]
  %s10 = inlined_call_operand.vmem [shape: f32[1,32], index: 10, kind: input, shape index: {}]
  %s11 = inlined_call_operand.vmem [shape: bf16[32,10], index: 11, kind: input, shape index: {}]
  %s12 = inlined_call_operand.vmem [shape: f32[1,10], index: 12, kind: input, shape index: {}]
  %s13 = inlined_call_operand.hbm [shape: f32[8,10], index: 13, kind: output, shape index: {}]
  %s14 = sld [smem:[#allocation0]]
  $region62: #{tpu_custom_call.1} parent=0
    _
  %s16 = ssub.s32 1, %s14
  %s17 = scalar_select 0, %s16, %s14
  $region1: #{tpu_custom_call.1} parent=0
    #allocation2 [shape = 'u8[4096]{0}', space=vmem, size = 0x1000, scoped, tag = 'output window, operand 0, single buffered']
    #allocation3 [shape = 's32[1]{0}', space=sflag, size = 0x4, scoped, tag = 'scoped memory for tpu_custom_call.1']
    %18 = vsyncpa [#allocation3], 0
    // Predicated region
    $region2: #{tpu_custom_call.1} parent=1 // pred_check
      _
    $region3: #{tpu_custom_call.1} parent=1 // pred_check_branch
      %20 = sbr.rel (0) target = $region5
    $region4: #{tpu_custom_call.1} parent=1 // pred_region
      _
    $region5: #{tpu_custom_call.1} parent=1 // pred_fallthru
      _
    // Predicated region
    $region6: #{tpu_custom_call.1} parent=1 // pred_check
      _
    $region7: #{tpu_custom_call.1} parent=1 // pred_check_branch
      %22 = sbr.rel (0) target = $region9
    $region8: #{tpu_custom_call.1} parent=1 // pred_region
      _
    $region9: #{tpu_custom_call.1} parent=1 // pred_fallthru
      _
    // Predicated region
    $region10: #{tpu_custom_call.1} parent=1 // pred_check
      _
    $region11: #{tpu_custom_call.1} parent=1 // pred_check_branch
      %24 = sbr.rel (0) target = $region13
    $region12: #{tpu_custom_call.1} parent=1 // pred_region
      _
    $region13: #{tpu_custom_call.1} parent=1 // pred_fallthru
      _
    // Predicated region
    $region14: #{tpu_custom_call.1} parent=1 // pred_check
      _
    $region15: #{tpu_custom_call.1} parent=1 // pred_check_branch
      %26 = sbr.rel (0) target = $region17
    $region16: #{tpu_custom_call.1} parent=1 // pred_region
      _
    $region17: #{tpu_custom_call.1} parent=1 // pred_fallthru
      _
    // Predicated region
    $region18: #{tpu_custom_call.1} parent=1 // pred_check
      _
    $region19: #{tpu_custom_call.1} parent=1 // pred_check_branch
      %28 = sbr.rel (0) target = $region21
    $region20: #{tpu_custom_call.1} parent=1 // pred_region
      _
    $region21: #{tpu_custom_call.1} parent=1 // pred_fallthru
      _
    // Predicated region
    $region22: #{tpu_custom_call.1} parent=1 // pred_check
      _
    $region23: #{tpu_custom_call.1} parent=1 // pred_check_branch
      %30 = sbr.rel (0) target = $region25
    $region24: #{tpu_custom_call.1} parent=1 // pred_region
      _
    $region25: #{tpu_custom_call.1} parent=1 // pred_fallthru
      _
    // Predicated region
    $region26: #{tpu_custom_call.1} parent=1 // pred_check
      _
    $region27: #{tpu_custom_call.1} parent=1 // pred_check_branch
      %32 = sbr.rel (0) target = $region29
    $region28: #{tpu_custom_call.1} parent=1 // pred_region
      _
    $region29: #{tpu_custom_call.1} parent=1 // pred_fallthru
      _
    // Predicated region
    $region30: #{tpu_custom_call.1} parent=1 // pred_check
      _
    $region31: #{tpu_custom_call.1} parent=1 // pred_check_branch
      %34 = sbr.rel (0) target = $region33
    $region32: #{tpu_custom_call.1} parent=1 // pred_region
      _
    $region33: #{tpu_custom_call.1} parent=1 // pred_fallthru
      _
    // Predicated region
    $region34: #{tpu_custom_call.1} parent=1 // pred_check
      _
    $region35: #{tpu_custom_call.1} parent=1 // pred_check_branch
      %36 = sbr.rel (0) target = $region37
    $region36: #{tpu_custom_call.1} parent=1 // pred_region
      _
    $region37: #{tpu_custom_call.1} parent=1 // pred_fallthru
      _
    // Predicated region
    $region38: #{tpu_custom_call.1} parent=1 // pred_check
      _
    $region39: #{tpu_custom_call.1} parent=1 // pred_check_branch
      %38 = sbr.rel (0) target = $region41
    $region40: #{tpu_custom_call.1} parent=1 // pred_region
      _
    $region41: #{tpu_custom_call.1} parent=1 // pred_fallthru
      _
    // Predicated region
    $region42: #{tpu_custom_call.1} parent=1 // pred_check
      _
    $region43: #{tpu_custom_call.1} parent=1 // pred_check_branch
      %40 = sbr.rel (0) target = $region45
    $region44: #{tpu_custom_call.1} parent=1 // pred_region
      _
    $region45: #{tpu_custom_call.1} parent=1 // pred_fallthru
      _
    // Predicated region
    $region46: #{tpu_custom_call.1} parent=1 // pred_check
      _
    $region47: #{tpu_custom_call.1} parent=1 // pred_check_branch
      %42 = sbr.rel (0) target = $region49
    $region48: #{tpu_custom_call.1} parent=1 // pred_region
      _
    $region49: #{tpu_custom_call.1} parent=1 // pred_fallthru
      _
    // Predicated region
    $region50: #{tpu_custom_call.1} parent=1 // pred_check
      _
    $region51: #{tpu_custom_call.1} parent=1 // pred_check_branch
      %44 = sbr.rel (0) target = $region53
    $region52: #{tpu_custom_call.1} parent=1 // pred_region
      _
    $region53: #{tpu_custom_call.1} parent=1 // pred_fallthru
      _
    %v46 = vld [vmem:[%s0] sm:$0xff]
    %v47 = vpack.c.bf16 %v46, %v46
    %v48 = vld [vmem:[%s1] sm:$0xf]
    %v49 = vld [vmem:[%s1 + $0x4] sm:$0xf]
    %v50 = vld [vmem:[%s2] sm:$0x1]
    %v52 = vlaneseq
    %v53 = vshrl.u32 %v52, 7
    %v54 = vsub.s32 0, %v53
    %v55 = vrot.slane %v50, %v54
    %v59 = vunpack.c.l.b16 %v48
    %v60 = vunpack.c.l.b16 %v49
    %v61 = vpack.c.b16 %v60, %v59
    %vm63 = vcmask 130048
    %v65 = vsel %vm63, %v47, 0
    %67 = vmatprep.subr.bf16.mxu0 0
    %68 = vmatpush1.bf16.msra.mxu0 0
    %69 = vmatprep.subr.bf16.mxu0 0
    %70 = vmatpush1.bf16.msra.mxu0 0
    %71 = vmatprep.subr.bf16.mxu0 0
    %72 = vmatpush1.bf16.msra.mxu0 0
    %73 = vmatprep.subr.bf16.mxu0 0
    %74 = vmatpush1.bf16.msra.mxu0 0
    %75 = vmatprep.subr.bf16.mxu0 0
    %76 = vmatpush1.bf16.msra.mxu0 0
    %77 = vmatprep.subr.bf16.mxu0 0
    %78 = vmatpush1.bf16.msra.mxu0 0
    %79 = vmatprep.subr.bf16.mxu0 0
    %80 = vmatpush1.bf16.msra.mxu0 0
    %81 = vmatprep.subr.bf16.mxu0 0
    %82 = vmatpush1.bf16.msra.mxu0 %v61
    %83 = vmatprep.subr.bf16.mxu0 0
    %84 = vmatpush2.bf16.msra.mxu0 0
    %85 = vmatprep.subr.bf16.mxu0 0
    %86 = vmatpush2.bf16.msra.mxu0 0
    %87 = vmatprep.subr.bf16.mxu0 0
    %88 = vmatpush2.bf16.msra.mxu0 0
    %89 = vmatprep.subr.bf16.mxu0 0
    %90 = vmatpush2.bf16.msra.mxu0 0
    %91 = vmatprep.subr.bf16.mxu0 0
    %92 = vmatpush2.bf16.msra.mxu0 0
    %93 = vmatprep.subr.bf16.mxu0 0
    %94 = vmatpush2.bf16.msra.mxu0 0
    %95 = vmatprep.subr.bf16.mxu0 0
    %96 = vmatpush2.bf16.msra.mxu0 0
    %97 = vmatprep.subr.bf16.mxu0 0
    %98 = vmatpush2.bf16.msra.mxu0 0
    %99 = vmatprep.mubr.bf16.mxu0 0
    %100 = vmatmul.mubr.bf16.gmra.mxu0 %v65
    %v101 = vpop.f32.mrf.mxu0
    %v102 = vadd.f32 %v55, %v101
    %v103 = vpop.f32.mrf.mxu0
    %v104 = vpop.f32.mrf.mxu0
    %v105 = vpop.f32.mrf.mxu0
    %106 = vdwg.mxu0
    %v107 = vmax.f32 %v102, 0.0
    %v108 = vpack.c.bf16 %v107, %v107
    %v109 = vld [vmem:[%s3] sm:$0xf]
    %v110 = vld [vmem:[%s3 + $0x4] sm:$0xf]
    %v111 = vld [vmem:[%s3 + $0x8] sm:$0xf]
    %v112 = vld [vmem:[%s3 + $0xc] sm:$0xf]
    %v113 = vld [vmem:[%s4] sm:$0x1]
    %v115 = vlaneseq
    %v116 = vshrl.u32 %v115, 7
    %v117 = vsub.s32 0, %v116
    %v118 = vrot.slane %v113, %v117
    %v124 = vunpack.c.l.b16 %v109
    %v125 = vunpack.c.l.b16 %v110
    %v126 = vunpack.c.l.b16 %v111
    %v127 = vunpack.c.l.b16 %v112
    %v128 = vpack.c.b16 %v125, %v124
    %v129 = vpack.c.b16 %v127, %v126
    %vm132 = vcmask 261120
    %v134 = vsel %vm132, %v108, 0
    %136 = vmatprep.subr.bf16.mxu0 0
    %137 = vmatpush1.bf16.msra.mxu0 0
    %138 = vmatprep.subr.bf16.mxu0 0
    %139 = vmatpush1.bf16.msra.mxu0 0
    %140 = vmatprep.subr.bf16.mxu0 0
    %141 = vmatpush1.bf16.msra.mxu0 0
    %142 = vmatprep.subr.bf16.mxu0 0
    %143 = vmatpush1.bf16.msra.mxu0 0
    %144 = vmatprep.subr.bf16.mxu0 0
    %145 = vmatpush1.bf16.msra.mxu0 0
    %146 = vmatprep.subr.bf16.mxu0 0
    %147 = vmatpush1.bf16.msra.mxu0 0
    %148 = vmatprep.subr.bf16.mxu0 0
    %149 = vmatpush1.bf16.msra.mxu0 %v129
    %150 = vmatprep.subr.bf16.mxu0 0
    %151 = vmatpush1.bf16.msra.mxu0 %v128
    %152 = vmatprep.subr.bf16.mxu0 0
    %153 = vmatpush2.bf16.msra.mxu0 0
    %154 = vmatprep.subr.bf16.mxu0 0
    %155 = vmatpush2.bf16.msra.mxu0 0
    %156 = vmatprep.subr.bf16.mxu0 0
    %157 = vmatpush2.bf16.msra.mxu0 0
    %158 = vmatprep.subr.bf16.mxu0 0
    %159 = vmatpush2.bf16.msra.mxu0 0
    %160 = vmatprep.subr.bf16.mxu0 0
    %161 = vmatpush2.bf16.msra.mxu0 0
    %162 = vmatprep.subr.bf16.mxu0 0
    %163 = vmatpush2.bf16.msra.mxu0 0
    %164 = vmatprep.subr.bf16.mxu0 0
    %165 = vmatpush2.bf16.msra.mxu0 0
    %166 = vmatprep.subr.bf16.mxu0 0
    %167 = vmatpush2.bf16.msra.mxu0 0
    %168 = vmatprep.mubr.bf16.mxu0 0
    %169 = vmatmul.mubr.bf16.gmra.mxu0 %v134
    %v170 = vpop.f32.mrf.mxu0
    %v171 = vadd.f32 %v118, %v170
    %v172 = vpop.f32.mrf.mxu0
    %v173 = vpop.f32.mrf.mxu0
    %v174 = vpop.f32.mrf.mxu0
    %175 = vdwg.mxu0
    %v176 = vmax.f32 %v171, 0.0
    %v177 = vpack.c.bf16 %v176, %v176
    %v178 = vld [vmem:[%s5] sm:$0xf]
    %v179 = vld [vmem:[%s5 + $0x4] sm:$0xf]
    %v180 = vld [vmem:[%s5 + $0x8] sm:$0xf]
    %v181 = vld [vmem:[%s5 + $0xc] sm:$0xf]
    %v182 = vld [vmem:[%s5 + $0x10] sm:$0xf]
    %v183 = vld [vmem:[%s5 + $0x14] sm:$0xf]
    %v184 = vld [vmem:[%s5 + $0x18] sm:$0xf]
    %v185 = vld [vmem:[%s5 + $0x1c] sm:$0xf]
    %v186 = vld [vmem:[%s6] sm:$0x1]
    %v188 = vlaneseq
    %v189 = vshrl.u32 %v188, 7
    %v190 = vsub.s32 0, %v189
    %v191 = vrot.slane %v186, %v190
    %v201 = vunpack.c.l.b16 %v178
    %v202 = vunpack.c.l.b16 %v179
    %v203 = vunpack.c.l.b16 %v180
    %v204 = vunpack.c.l.b16 %v181
    %v205 = vunpack.c.l.b16 %v182
    %v206 = vunpack.c.l.b16 %v183
    %v207 = vunpack.c.l.b16 %v184
    %v208 = vunpack.c.l.b16 %v185
    %v209 = vpack.c.b16 %v202, %v201
    %v210 = vpack.c.b16 %v204, %v203
    %v211 = vpack.c.b16 %v206, %v205
    %v212 = vpack.c.b16 %v208, %v207
    %vm217 = vcmask 523264
    %v219 = vsel %vm217, %v177, 0
    %221 = vmatprep.subr.bf16.mxu0 0
    %222 = vmatpush1.bf16.msra.mxu0 0
    %223 = vmatprep.subr.bf16.mxu0 0
    %224 = vmatpush1.bf16.msra.mxu0 0
    %225 = vmatprep.subr.bf16.mxu0 0
    %226 = vmatpush1.bf16.msra.mxu0 0
    %227 = vmatprep.subr.bf16.mxu0 0
    %228 = vmatpush1.bf16.msra.mxu0 0
    %229 = vmatprep.subr.bf16.mxu0 0
    %230 = vmatpush1.bf16.msra.mxu0 %v212
    %231 = vmatprep.subr.bf16.mxu0 0
    %232 = vmatpush1.bf16.msra.mxu0 %v211
    %233 = vmatprep.subr.bf16.mxu0 0
    %234 = vmatpush1.bf16.msra.mxu0 %v210
    %235 = vmatprep.subr.bf16.mxu0 0
    %236 = vmatpush1.bf16.msra.mxu0 %v209
    %237 = vmatprep.subr.bf16.mxu0 0
    %238 = vmatpush2.bf16.msra.mxu0 0
    %239 = vmatprep.subr.bf16.mxu0 0
    %240 = vmatpush2.bf16.msra.mxu0 0
    %241 = vmatprep.subr.bf16.mxu0 0
    %242 = vmatpush2.bf16.msra.mxu0 0
    %243 = vmatprep.subr.bf16.mxu0 0
    %244 = vmatpush2.bf16.msra.mxu0 0
    %245 = vmatprep.subr.bf16.mxu0 0
    %246 = vmatpush2.bf16.msra.mxu0 0
    %247 = vmatprep.subr.bf16.mxu0 0
    %248 = vmatpush2.bf16.msra.mxu0 0
    %249 = vmatprep.subr.bf16.mxu0 0
    %250 = vmatpush2.bf16.msra.mxu0 0
    %251 = vmatprep.subr.bf16.mxu0 0
    %252 = vmatpush2.bf16.msra.mxu0 0
    %253 = vmatprep.mubr.bf16.mxu0 0
    %254 = vmatmul.mubr.bf16.gmra.mxu0 %v219
    %v255 = vpop.f32.mrf.mxu0
    %v256 = vadd.f32 %v191, %v255
    %v257 = vpop.f32.mrf.mxu0
    %v258 = vpop.f32.mrf.mxu0
    %v259 = vpop.f32.mrf.mxu0
    %260 = vdwg.mxu0
    %v261 = vpack.c.bf16 %v256, %v256
    %v262 = vld [vmem:[%s7] sm:$0xf]
    %v263 = vld [vmem:[%s7 + $0x4] sm:$0xf]
    %v264 = vld [vmem:[%s7 + $0x8] sm:$0xf]
    %v265 = vld [vmem:[%s7 + $0xc] sm:$0xf]
    %v266 = vld [vmem:[%s7 + $0x10] sm:$0xf]
    %v267 = vld [vmem:[%s7 + $0x14] sm:$0xf]
    %v268 = vld [vmem:[%s7 + $0x18] sm:$0xf]
    %v269 = vld [vmem:[%s7 + $0x1c] sm:$0xf]
    %v270 = vld [vmem:[%s7 + $0x20] sm:$0xf]
    %v271 = vld [vmem:[%s7 + $0x24] sm:$0xf]
    %v272 = vld [vmem:[%s7 + $0x28] sm:$0xf]
    %v273 = vld [vmem:[%s7 + $0x2c] sm:$0xf]
    %v274 = vld [vmem:[%s7 + $0x30] sm:$0xf]
    %v275 = vld [vmem:[%s7 + $0x34] sm:$0xf]
    %v276 = vld [vmem:[%s7 + $0x38] sm:$0xf]
    %v277 = vld [vmem:[%s7 + $0x3c] sm:$0xf]
    %v278 = vld [vmem:[%s8] sm:$0x1]
    %v280 = vlaneseq
    %v281 = vshrl.u32 %v280, 7
    %v282 = vsub.s32 0, %v281
    %v283 = vrot.slane %v278, %v282
    %v301 = vunpack.c.l.b16 %v262
    %v302 = vunpack.c.l.b16 %v263
    %v303 = vunpack.c.l.b16 %v264
    %v304 = vunpack.c.l.b16 %v265
    %v305 = vunpack.c.l.b16 %v266
    %v306 = vunpack.c.l.b16 %v267
    %v307 = vunpack.c.l.b16 %v268
    %v308 = vunpack.c.l.b16 %v269
    %v309 = vunpack.c.l.b16 %v270
    %v310 = vunpack.c.l.b16 %v271
    %v311 = vunpack.c.l.b16 %v272
    %v312 = vunpack.c.l.b16 %v273
    %v313 = vunpack.c.l.b16 %v274
    %v314 = vunpack.c.l.b16 %v275
    %v315 = vunpack.c.l.b16 %v276
    %v316 = vunpack.c.l.b16 %v277
    %v317 = vpack.c.b16 %v302, %v301
    %v318 = vpack.c.b16 %v304, %v303
    %v319 = vpack.c.b16 %v306, %v305
    %v320 = vpack.c.b16 %v308, %v307
    %v321 = vpack.c.b16 %v310, %v309
    %v322 = vpack.c.b16 %v312, %v311
    %v323 = vpack.c.b16 %v314, %v313
    %v324 = vpack.c.b16 %v316, %v315
    %333 = vmatprep.subr.bf16.mxu0 0
    %334 = vmatpush1.bf16.msra.mxu0 %v324
    %335 = vmatprep.subr.bf16.mxu0 0
    %336 = vmatpush1.bf16.msra.mxu0 %v323
    %337 = vmatprep.subr.bf16.mxu0 0
    %338 = vmatpush1.bf16.msra.mxu0 %v322
    %339 = vmatprep.subr.bf16.mxu0 0
    %340 = vmatpush1.bf16.msra.mxu0 %v321
    %341 = vmatprep.subr.bf16.mxu0 0
    %342 = vmatpush1.bf16.msra.mxu0 %v320
    %343 = vmatprep.subr.bf16.mxu0 0
    %344 = vmatpush1.bf16.msra.mxu0 %v319
    %345 = vmatprep.subr.bf16.mxu0 0
    %346 = vmatpush1.bf16.msra.mxu0 %v318
    %347 = vmatprep.subr.bf16.mxu0 0
    %348 = vmatpush1.bf16.msra.mxu0 %v317
    %349 = vmatprep.subr.bf16.mxu0 0
    %350 = vmatpush2.bf16.msra.mxu0 0
    %351 = vmatprep.subr.bf16.mxu0 0
    %352 = vmatpush2.bf16.msra.mxu0 0
    %353 = vmatprep.subr.bf16.mxu0 0
    %354 = vmatpush2.bf16.msra.mxu0 0
    %355 = vmatprep.subr.bf16.mxu0 0
    %356 = vmatpush2.bf16.msra.mxu0 0
    %357 = vmatprep.subr.bf16.mxu0 0
    %358 = vmatpush2.bf16.msra.mxu0 0
    %359 = vmatprep.subr.bf16.mxu0 0
    %360 = vmatpush2.bf16.msra.mxu0 0
    %361 = vmatprep.subr.bf16.mxu0 0
    %362 = vmatpush2.bf16.msra.mxu0 0
    %363 = vmatprep.subr.bf16.mxu0 0
    %364 = vmatpush2.bf16.msra.mxu0 0
    %365 = vmatprep.mubr.bf16.mxu0 0
    %366 = vmatmul.mubr.bf16.gmra.mxu0 %v261
    %v367 = vpop.f32.mrf.mxu0
    %v368 = vadd.f32 %v283, %v367
    %v369 = vpop.f32.mrf.mxu0
    %v370 = vpop.f32.mrf.mxu0
    %v371 = vpop.f32.mrf.mxu0
    %372 = vdwg.mxu0
    %v373 = vmax.f32 %v368, 0.0
    %v374 = vpack.c.bf16 %v373, %v373
    %v375 = vld [vmem:[%s9] sm:$0xf]
    %v376 = vld [vmem:[%s9 + $0x4] sm:$0xf]
    %v377 = vld [vmem:[%s9 + $0x8] sm:$0xf]
    %v378 = vld [vmem:[%s9 + $0xc] sm:$0xf]
    %v379 = vld [vmem:[%s9 + $0x10] sm:$0xf]
    %v380 = vld [vmem:[%s9 + $0x14] sm:$0xf]
    %v381 = vld [vmem:[%s9 + $0x18] sm:$0xf]
    %v382 = vld [vmem:[%s9 + $0x1c] sm:$0xf]
    %v383 = vld [vmem:[%s10] sm:$0x1]
    %v385 = vlaneseq
    %v386 = vshrl.u32 %v385, 7
    %v387 = vsub.s32 0, %v386
    %v388 = vrot.slane %v383, %v387
    %v398 = vunpack.c.l.b16 %v375
    %v399 = vunpack.c.l.b16 %v376
    %v400 = vunpack.c.l.b16 %v377
    %v401 = vunpack.c.l.b16 %v378
    %v402 = vunpack.c.l.b16 %v379
    %v403 = vunpack.c.l.b16 %v380
    %v404 = vunpack.c.l.b16 %v381
    %v405 = vunpack.c.l.b16 %v382
    %v406 = vpack.c.b16 %v399, %v398
    %v407 = vpack.c.b16 %v401, %v400
    %v408 = vpack.c.b16 %v403, %v402
    %v409 = vpack.c.b16 %v405, %v404
    %v415 = vsel %vm217, %v374, 0
    %417 = vmatprep.subr.bf16.mxu0 0
    %418 = vmatpush1.bf16.msra.mxu0 0
    %419 = vmatprep.subr.bf16.mxu0 0
    %420 = vmatpush1.bf16.msra.mxu0 0
    %421 = vmatprep.subr.bf16.mxu0 0
    %422 = vmatpush1.bf16.msra.mxu0 0
    %423 = vmatprep.subr.bf16.mxu0 0
    %424 = vmatpush1.bf16.msra.mxu0 0
    %425 = vmatprep.subr.bf16.mxu0 0
    %426 = vmatpush1.bf16.msra.mxu0 %v409
    %427 = vmatprep.subr.bf16.mxu0 0
    %428 = vmatpush1.bf16.msra.mxu0 %v408
    %429 = vmatprep.subr.bf16.mxu0 0
    %430 = vmatpush1.bf16.msra.mxu0 %v407
    %431 = vmatprep.subr.bf16.mxu0 0
    %432 = vmatpush1.bf16.msra.mxu0 %v406
    %433 = vmatprep.subr.bf16.mxu0 0
    %434 = vmatpush2.bf16.msra.mxu0 0
    %435 = vmatprep.subr.bf16.mxu0 0
    %436 = vmatpush2.bf16.msra.mxu0 0
    %437 = vmatprep.subr.bf16.mxu0 0
    %438 = vmatpush2.bf16.msra.mxu0 0
    %439 = vmatprep.subr.bf16.mxu0 0
    %440 = vmatpush2.bf16.msra.mxu0 0
    %441 = vmatprep.subr.bf16.mxu0 0
    %442 = vmatpush2.bf16.msra.mxu0 0
    %443 = vmatprep.subr.bf16.mxu0 0
    %444 = vmatpush2.bf16.msra.mxu0 0
    %445 = vmatprep.subr.bf16.mxu0 0
    %446 = vmatpush2.bf16.msra.mxu0 0
    %447 = vmatprep.subr.bf16.mxu0 0
    %448 = vmatpush2.bf16.msra.mxu0 0
    %449 = vmatprep.mubr.bf16.mxu0 0
    %450 = vmatmul.mubr.bf16.gmra.mxu0 %v415
    %v451 = vpop.f32.mrf.mxu0
    %v452 = vadd.f32 %v388, %v451
    %v453 = vpop.f32.mrf.mxu0
    %v454 = vpop.f32.mrf.mxu0
    %v455 = vpop.f32.mrf.mxu0
    %456 = vdwg.mxu0
    %v457 = vmax.f32 %v452, 0.0
    %v458 = vpack.c.bf16 %v457, %v457
    %v459 = vld [vmem:[%s11] sm:$0xf]
    %v460 = vld [vmem:[%s11 + $0x4] sm:$0xf]
    %v461 = vld [vmem:[%s11 + $0x8] sm:$0xf]
    %v462 = vld [vmem:[%s11 + $0xc] sm:$0xf]
    %v463 = vld [vmem:[%s12] sm:$0x1]
    %v465 = vlaneseq
    %v466 = vshrl.u32 %v465, 7
    %v467 = vsub.s32 0, %v466
    %v468 = vrot.slane %v463, %v467
    %v474 = vunpack.c.l.b16 %v459
    %v475 = vunpack.c.l.b16 %v460
    %v476 = vunpack.c.l.b16 %v461
    %v477 = vunpack.c.l.b16 %v462
    %v478 = vpack.c.b16 %v475, %v474
    %v479 = vpack.c.b16 %v477, %v476
    %v483 = vsel %vm132, %v458, 0
    %485 = vmatprep.subr.bf16.mxu0 0
    %486 = vmatpush1.bf16.msra.mxu0 0
    %487 = vmatprep.subr.bf16.mxu0 0
    %488 = vmatpush1.bf16.msra.mxu0 0
    %489 = vmatprep.subr.bf16.mxu0 0
    %490 = vmatpush1.bf16.msra.mxu0 0
    %491 = vmatprep.subr.bf16.mxu0 0
    %492 = vmatpush1.bf16.msra.mxu0 0
    %493 = vmatprep.subr.bf16.mxu0 0
    %494 = vmatpush1.bf16.msra.mxu0 0
    %495 = vmatprep.subr.bf16.mxu0 0
    %496 = vmatpush1.bf16.msra.mxu0 0
    %497 = vmatprep.subr.bf16.mxu0 0
    %498 = vmatpush1.bf16.msra.mxu0 %v479
    %499 = vmatprep.subr.bf16.mxu0 0
    %500 = vmatpush1.bf16.msra.mxu0 %v478
    %501 = vmatprep.subr.bf16.mxu0 0
    %502 = vmatpush2.bf16.msra.mxu0 0
    %503 = vmatprep.subr.bf16.mxu0 0
    %504 = vmatpush2.bf16.msra.mxu0 0
    %505 = vmatprep.subr.bf16.mxu0 0
    %506 = vmatpush2.bf16.msra.mxu0 0
    %507 = vmatprep.subr.bf16.mxu0 0
    %508 = vmatpush2.bf16.msra.mxu0 0
    %509 = vmatprep.subr.bf16.mxu0 0
    %510 = vmatpush2.bf16.msra.mxu0 0
    %511 = vmatprep.subr.bf16.mxu0 0
    %512 = vmatpush2.bf16.msra.mxu0 0
    %513 = vmatprep.subr.bf16.mxu0 0
    %514 = vmatpush2.bf16.msra.mxu0 0
    %515 = vmatprep.subr.bf16.mxu0 0
    %516 = vmatpush2.bf16.msra.mxu0 0
    %517 = vmatprep.mubr.bf16.mxu0 0
    %518 = vmatmul.mubr.bf16.gmra.mxu0 %v483
    %v519 = vpop.f32.mrf.mxu0
    %v520 = vadd.f32 %v468, %v519
    %v521 = vpop.f32.mrf.mxu0
    %v522 = vpop.f32.mrf.mxu0
    %v523 = vpop.f32.mrf.mxu0
    %524 = vdwg.mxu0
    %vm525 = vcmask 80896
    %v526 = vsel %vm525, %v520, -inf
    %527 = vmax.xlane.f32.xlu0 %v526
    %v528 = vpop.xlane.xlu0 %527
    %v529 = vsub.f32 %v520, %v528
    %v530 = vmul.f32 %v529, 1.442695
    %v531 = vpow.pop %v530
    %v532 = vsel %vm525, %v531, 0.0
    %533 = vadd.xlane.f32.xlu0 %v532
    %v534 = vpop.xlane.xlu0 %533
    %v535 = vrcp.pop %v534
    %v536 = vmul.f32 %v531, %v535
    %537 = vst.msk [vmem:[#allocation2] sm:$0xff] %vm525, %v536
    // Predicated region
    $region54: #{tpu_custom_call.1} parent=1 // pred_check
      _
    $region55: #{tpu_custom_call.1} parent=1 // pred_check_branch
      %539 = sbr.rel (0) target = $region57
    $region56: #{tpu_custom_call.1} parent=1 // pred_region
      %s541 = ssub.s32 128, 128
      %542 = vsyncadd [#allocation3], %s541
      %s544 = sshll.u32 [#allocation2], 4
      %s545 = int_to_ptr.vmem [resolvable:$true] %s544
      %547 = dma.vmem_to_hbm [thread:$0]  %s545, 128, %s13, [#allocation3]
    $region57: #{tpu_custom_call.1} parent=1 // pred_fallthru
      _
    // Predicated region
    $region58: #{tpu_custom_call.1} parent=1 // pred_check
      _
    $region59: #{tpu_custom_call.1} parent=1 // pred_check_branch
      %549 = sbr.rel (0) target = $region61
    $region60: #{tpu_custom_call.1} parent=1 // pred_region
      %550 = dma.done [#allocation3], 128
    $region61: #{tpu_custom_call.1} parent=1 // pred_fallthru
      _
    %551 = vsyncpa [#allocation3], 1

</llo_original>
